<compile_context>
chip_gen: v7x
topology: tpu7x:2x2x1
jax: 0.10.0
libtpu: 0.0.40
codegen_flags: <defaults>
</compile_context>

<pallas_src>
import math
from functools import lru_cache

import jax
import jax.numpy as jnp
from jax.experimental import pallas as pl
from jax.experimental.pallas import tpu as pltpu


def _round_up(x, m):
    return ((x + m - 1) // m) * m


def _pe_kernel(pos_ref, freq_ref, phase_ref, out_ref):
    # pos_ref:   (TL, 1)     absolute position of each row of this tile
    # freq_ref:  (1, D_pad)  interleaved div_term (column c -> div_term[c // 2])
    # phase_ref: (1, D_pad)  (c % 2) * pi/2 -> even lanes sin, odd lanes cos
    # out_ref:   (TL, D_pad) one lane-dense tile of the interleaved pe table
    arg = pos_ref[...] * freq_ref[...] + phase_ref[...]   # (TL,1)*(1,D)+(1,D) -> (TL,D)
    out_ref[...] = jnp.sin(arg).astype(out_ref.dtype)


@lru_cache(maxsize=None)
def _build_pe_table(d_model, max_len, dtype=jnp.float32):
    """Build the (max_len, 1, d_model) sinusoidal buffer once (memoized).

    Note: memoization pins each (d_model, max_len, dtype) table in HBM for the
    process lifetime (mirrors register_buffer); call
    _build_pe_table.cache_clear() if many configs get built.
    """
    assert d_model % 2 == 0, "d_model must be even (as in the PyTorch module)"
    itemsize = jnp.dtype(dtype).itemsize

    # Lane-dense output width.  For d_model < 128 this pads the (one-time,
    # few-KB) build up to 128 lanes; a second non-Pallas code path for such
    # tiny tables was judged not worth the complexity.
    D_pad = _round_up(max(d_model, 128), 128)

    # ---- host-side precompute (hoisted out of the kernel) -------------------
    # Identical math to the PyTorch buffer:
    #   div_term = exp(arange(0, d_model, 2) * (-ln(10000) / d_model))
    two_k = jnp.arange(0, d_model, 2, dtype=jnp.float32)
    div_term = jnp.exp(two_k * (-math.log(10000.0) / d_model))       # (d_model//2,)
    freq = jnp.zeros((1, D_pad), jnp.float32)
    freq = freq.at[0, :d_model].set(jnp.repeat(div_term, 2))         # c -> div_term[c//2]
    phase = jnp.zeros((1, D_pad), jnp.float32)
    phase = phase.at[0, 1:d_model:2].set(0.5 * math.pi)              # odd lanes: +pi/2

    # ---- sequence tiling ----------------------------------------------------
    # Large tiles (fewer ~0.35us grid steps), an even step count >= 2 so the
    # "parallel" axis splits evenly across two TensorCores (v7x megacore), and
    # a 16 MiB cap on the double-buffered output tile.  TL is a multiple of 16
    # so bf16 tiles also satisfy the sublane tiling constraint.
    rows = _round_up(max_len, 8)
    budget = 16 * 1024 * 1024
    tl_cap = max(16, min(2048, (budget // (2 * D_pad * itemsize)) // 16 * 16))
    steps = pl.cdiv(rows, tl_cap)
    if steps % 2:
        steps += 1
    steps = max(1, min(steps, rows // 16))          # never shrink below a 16-row tile
    TL = _round_up(pl.cdiv(rows, steps), 16)
    grid = (pl.cdiv(rows, TL),)
    padded_rows = grid[0] * TL

    pos = jnp.arange(padded_rows, dtype=jnp.float32)[:, None]        # (padded_rows, 1)

    table = pl.pallas_call(
        _pe_kernel,
        out_shape=jax.ShapeDtypeStruct((padded_rows, D_pad), dtype),
        grid_spec=pltpu.PrefetchScalarGridSpec(
            num_scalar_prefetch=0,
            grid=grid,
            in_specs=[
                pl.BlockSpec((TL, 1), lambda i: (i, 0)),       # positions
                pl.BlockSpec((1, D_pad), lambda i: (0, 0)),    # frequencies (hoisted exp)
                pl.BlockSpec((1, D_pad), lambda i: (0, 0)),    # parity phase
            ],
            out_specs=pl.BlockSpec((TL, D_pad), lambda i: (i, 0)),
        ),
        compiler_params=pltpu.CompilerParams(
            dimension_semantics=("parallel",),
            vmem_limit_bytes=32 * 1024 * 1024,
        ),
    )(pos, freq, phase)

    # Pure pad-slice (no interleave pass): drop lane/row padding and add the
    # batch axis of the PyTorch buffer -> (max_len, 1, d_model).
    return table[:max_len, :d_model][:, None, :]


class PositionalEncoding:
    """Drop-in equivalent of the PyTorch module (pos_embedding_trained=False).

    The buffer is built once by the Pallas kernel and memoized; __call__ is
    just pe[:x.shape[0]].  Consume the result inside the caller's jit so the
    slice fuses with the following add (no recurring eager device copy).
    """

    def __init__(self, d_model, max_len=5000, dtype=jnp.float32):
        self.pe = _build_pe_table(d_model, max_len, dtype)   # like register_buffer

    def __call__(self, x):
        assert x.shape[0] <= self.pe.shape[0], "sequence longer than max_len"
        return self.pe[: x.shape[0]]


def positional_encoding_forward(x, d_model, max_len=5000, dtype=jnp.float32):
    """Functional form: returns pe[:x.shape[0]] with shape (seq_len, 1, d_model)."""
    seq_len = x.shape[0]
    assert seq_len <= max_len, "sequence longer than max_len"
    return _build_pe_table(d_model, max_len, dtype)[:seq_len]


# TODO(synk): the rest of AnCoGen.forward (Embedding projections, Dirichlet
# ratio sampling + host-side numpy random_indexes/TokenShuffle permutations,
# transformer Blocks, LayerNorm, mask-token gather/scatter, per-modality
# Linear heads) is host control flow / standard dense XLA and is not
# re-implemented as a single Pallas kernel here.


def _reference_pe(seq_len, d_model):
    pos = jnp.arange(seq_len, dtype=jnp.float32)[:, None]
    div_term = jnp.exp(
        jnp.arange(0, d_model, 2, dtype=jnp.float32) * (-math.log(10000.0) / d_model)
    )
    pe = jnp.zeros((seq_len, d_model), jnp.float32)
    pe = pe.at[:, 0::2].set(jnp.sin(pos * div_term))
    pe = pe.at[:, 1::2].set(jnp.cos(pos * div_term))
    return pe[:, None, :]


if __name__ == "__main__":
    d_model = 32
    seq_len = 8
    batch = 2
    max_len = 64

    key = jax.random.PRNGKey(0)
    # x: (seq_len, batch, d_model) — only x.shape[0] is used by this module.
    x = jax.random.normal(key, (seq_len, batch, d_model), dtype=jnp.float32)

    # module-style usage (buffer built once at init, sliced per forward)
    pos_enc = PositionalEncoding(d_model=d_model, max_len=max_len)
    out = jax.block_until_ready(pos_enc(x))
    ref = _reference_pe(seq_len, d_model)
    assert out.shape == (seq_len, 1, d_model)
    assert jnp.allclose(out, ref, atol=1e-5, rtol=1e-5)

    # functional form hits the same memoized table (no second kernel launch)
    out2 = jax.block_until_ready(positional_encoding_forward(x, d_model, max_len))
    assert jnp.allclose(out2, ref, atol=1e-5, rtol=1e-5)

    # Full-scale validation at the PyTorch default max_len=5000 (review
    # correctness concern).  The full-table tolerance is dominated by the
    # ulp-scale fp32 argument/phase error at |arg| ~= max_len from the
    # cos(x)=sin(x+pi/2) fusion (~2.4e-4); a low-position prefix stays at
    # f32 round-off level.
    big_d, big_len = 256, 5000
    pe_big = jax.block_until_ready(_build_pe_table(big_d, big_len))
    ref_big = _reference_pe(big_len, big_d)
    assert pe_big.shape == (big_len, 1, big_d)
    assert jnp.allclose(pe_big, ref_big, atol=2e-3, rtol=0.0)
    assert jnp.allclose(pe_big[:64], ref_big[:64], atol=1e-5, rtol=1e-5)

    # bf16 table option (halves writeback and the cached buffer); tolerance is
    # bf16 quantization of values in [-1, 1].
    pe_bf16 = jax.block_until_ready(_build_pe_table(256, 512, jnp.bfloat16))
    ref_bf16 = _reference_pe(512, 256)
    assert jnp.allclose(pe_bf16.astype(jnp.float32), ref_bf16, atol=8e-3, rtol=0.0)

    print("KERNEL_OK")
</pallas_src>

<mosaic_0001>
module attributes {stable_mosaic.version = 11 : i64} {
  func.func @_pe_kernel(%arg0: i32, %arg1: memref<32x1xf32, #tpu.memory_space<vmem>>, %arg2: memref<1x128xf32, #tpu.memory_space<vmem>>, %arg3: memref<1x128xf32, #tpu.memory_space<vmem>>, %arg4: memref<32x128xf32, #tpu.memory_space<vmem>>) attributes {dimension_semantics = [#tpu.dimension_semantics<parallel>], iteration_bounds = array<i64: 2>, scalar_prefetch = 0 : i64, scratch_operands = 0 : i64, tpu.core_type = #tpu.core_type<tc>, window_params = [{transform_indices = @transform_0, window_bounds = array<i64: 32, 1>}, {pipeline_mode = #tpu.pipeline_mode<synchronous>, transform_indices = @transform_1, window_bounds = array<i64: 1, 128>}, {pipeline_mode = #tpu.pipeline_mode<synchronous>, transform_indices = @transform_2, window_bounds = array<i64: 1, 128>}, {transform_indices = @transform_3, window_bounds = array<i64: 32, 128>}]} {
    %c0 = arith.constant 0 : index
    %c0_0 = arith.constant 0 : index
    %0 = vector.load %arg1[%c0, %c0_0] : memref<32x1xf32, #tpu.memory_space<vmem>>, vector<32x1xf32>
    %c0_1 = arith.constant 0 : index
    %c0_2 = arith.constant 0 : index
    %1 = vector.load %arg2[%c0_1, %c0_2] : memref<1x128xf32, #tpu.memory_space<vmem>>, vector<1x128xf32>
    %2 = vector.broadcast %0 : vector<32x1xf32> to vector<32x128xf32>
    %3 = vector.broadcast %1 : vector<1x128xf32> to vector<32x128xf32>
    %4 = arith.mulf %2, %3 : vector<32x128xf32>
    %c0_3 = arith.constant 0 : index
    %c0_4 = arith.constant 0 : index
    %5 = vector.load %arg3[%c0_3, %c0_4] : memref<1x128xf32, #tpu.memory_space<vmem>>, vector<1x128xf32>
    %6 = vector.broadcast %5 : vector<1x128xf32> to vector<32x128xf32>
    %7 = arith.addf %4, %6 : vector<32x128xf32>
    %8 = math.sin %7 : vector<32x128xf32>
    %c0_5 = arith.constant 0 : index
    %c0_6 = arith.constant 0 : index
    %9 = vector.load %arg4[%c0_5, %c0_6] : memref<32x128xf32, #tpu.memory_space<vmem>>, vector<32x128xf32>
    tpu.vector_store %arg4[%c0_5, %c0_6], %8 {strides = array<i32>} : memref<32x128xf32, #tpu.memory_space<vmem>>, vector<32x128xf32>,
    return
  }
  func.func @transform_0(%arg0: i32) -> (i32, i32) {
    %c0_i32 = arith.constant 0 : i32
    %c0_i32_0 = arith.constant 0 : i32
    return %arg0, %c0_i32 : i32, i32
  }
  func.func @transform_1(%arg0: i32) -> (i32, i32) {
    %c0_i32 = arith.constant 0 : i32
    %c0_i32_0 = arith.constant 0 : i32
    %c0_i32_1 = arith.constant 0 : i32
    return %c0_i32, %c0_i32_0 : i32, i32
  }
  func.func @transform_2(%arg0: i32) -> (i32, i32) {
    %c0_i32 = arith.constant 0 : i32
    %c0_i32_0 = arith.constant 0 : i32
    %c0_i32_1 = arith.constant 0 : i32
    return %c0_i32, %c0_i32_0 : i32, i32
  }
  func.func @transform_3(%arg0: i32) -> (i32, i32) {
    %c0_i32 = arith.constant 0 : i32
    %c0_i32_0 = arith.constant 0 : i32
    return %arg0, %c0_i32 : i32, i32
  }
}

</mosaic_0001>

<llo_original>
// kernel: tpu_custom_call.1
$region0: #{tpu_custom_call.1}
  #allocation0 [shape = 'u32[]', space=smem, size = 0x4, offset = 0x4, fixed_abs, tag = 'smem constant byte address 0x4 - core index']
  #allocation1 [shape = 'u32[144,128]{1,0:T(1,128)}', space=vmem, size = 0x12000, scoped, tag = 'internal scratch']
  %s0 = inlined_call_operand.vmem [shape: f32[64,1], index: 0, kind: input, shape index: {}]
  %s1 = inlined_call_operand.vmem [shape: f32[1,128], index: 1, kind: input, shape index: {}]
  %s2 = inlined_call_operand.vmem [shape: f32[1,128], index: 2, kind: input, shape index: {}]
  %s3 = inlined_call_operand.hbm [shape: f32[64,128], index: 3, kind: output, shape index: {}]
  %s4 = sld [smem:[#allocation0]]
  $region45: #{tpu_custom_call.1} parent=0
    _
  %s6 = ssub.s32 1, %s4
  %s7 = scalar_select 0, %s6, %s4
  $region1: #{tpu_custom_call.1} parent=0
    #allocation2 [shape = 'u8[32768]{0}', space=vmem, size = 0x8000, scoped, tag = 'output window, operand 0']
    #allocation3 [shape = 's32[2]{0}', space=sflag, size = 0x8, scoped, tag = 'scoped memory for tpu_custom_call.1']
    %8 = vsyncpa [#allocation3], 0
    %s9 = scalar_lea.sflag [#allocation3], 1
    %10 = vsyncpa %s9, 0
    loop: start=0, step=1, limit=4
    $region2: #{tpu_custom_call.1} parent=1 // loop_pre_header
      _
    $region3: #{tpu_custom_call.1} parent=1 // loop_header
      %s12 = sphi 0, %s16
      %p13 = scmp.ge.s32.totalorder %s12, 4
      %s22 = sphi 0, %s24
      %s25 = sphi 0, %s22
      %s26 = sphi 0, %s25
      %s42 = sphi 0, %s26
      %s46 = sphi 0, %s46
      %s48 = sphi 0, %s46
      %s49 = sphi 0, %s48
      %s63 = sphi 0, %s49
      %s67 = sphi 0, %s67
      %s69 = sphi 0, %s67
      %s70 = sphi 0, %s69
      %s84 = sphi 0, %s70
      %s90 = sphi 0, %s92
      %s93 = sphi 0, %s90
      %s94 = sphi 0, %s93
      %s110 = sphi 0, %s94
    $region4: #{tpu_custom_call.1} parent=1 // loop_header_branch
      %15 = sbr.rel (%p13) target = $region8
    $region5: #{tpu_custom_call.1} parent=1 // loop_body
      %s17 = ssub.s32 %s12, 1
      %s18 = ssub.s32 %s12, 2
      %s19 = sadd.s32 %s12, 1
      %s20 = ssub.s32 %s12, %s19
      %p21 = scmp.eq.s32.totalorder %s20, 0
      %s23 = sadd.s32 %s22, 1
      %s24 = scalar_select %p21, %s22, %s23
      %p27 = pneg %p21
      %p28 = scmp.eq.s32.totalorder %s12, 1
      %p29 = por %p27, %p28
      %p30 = scmp.ne.s32.totalorder %s22, %s25
      %p31 = scmp.eq.s32.totalorder %s12, 0
      %p32 = por %p30, %p31
      %p33 = scmp.ne.s32.totalorder %s22, %s25
      %p34 = scmp.eq.s32.totalorder %s17, 1
      %p35 = por %p33, %p34
      %p36 = scmp.ne.s32.totalorder %s25, %s26
      %p37 = scmp.eq.s32.totalorder %s17, 0
      %p38 = por %p36, %p37
      %p39 = scmp.ne.s32.totalorder %s25, %s26
      %p40 = scmp.eq.s32.totalorder %s18, 1
      %p41 = por %p39, %p40
      %p43 = scmp.ne.s32.totalorder %s26, %s42
      %p44 = scmp.eq.s32.totalorder %s18, 0
      %p45 = por %p43, %p44
      %s47 = sadd.s32 %s46, 1
      %p50 = scmp.eq.s32.totalorder %s12, 1
      %p51 = scmp.ne.s32.totalorder %s46, %s48
      %p52 = scmp.eq.s32.totalorder %s12, 0
      %p53 = por %p51, %p52
      %p54 = scmp.ne.s32.totalorder %s46, %s48
      %p55 = scmp.eq.s32.totalorder %s17, 1
      %p56 = por %p54, %p55
      %p57 = scmp.ne.s32.totalorder %s48, %s49
      %p58 = scmp.eq.s32.totalorder %s17, 0
      %p59 = por %p57, %p58
      %p60 = scmp.ne.s32.totalorder %s48, %s49
      %p61 = scmp.eq.s32.totalorder %s18, 1
      %p62 = por %p60, %p61
      %p64 = scmp.ne.s32.totalorder %s49, %s63
      %p65 = scmp.eq.s32.totalorder %s18, 0
      %p66 = por %p64, %p65
      %s68 = sadd.s32 %s67, 1
      %p71 = scmp.eq.s32.totalorder %s12, 1
      %p72 = scmp.ne.s32.totalorder %s67, %s69
      %p73 = scmp.eq.s32.totalorder %s12, 0
      %p74 = por %p72, %p73
      %p75 = scmp.ne.s32.totalorder %s67, %s69
      %p76 = scmp.eq.s32.totalorder %s17, 1
      %p77 = por %p75, %p76
      %p78 = scmp.ne.s32.totalorder %s69, %s70
      %p79 = scmp.eq.s32.totalorder %s17, 0
      %p80 = por %p78, %p79
      %p81 = scmp.ne.s32.totalorder %s69, %s70
      %p82 = scmp.eq.s32.totalorder %s18, 1
      %p83 = por %p81, %p82
      %p85 = scmp.ne.s32.totalorder %s70, %s84
      %p86 = scmp.eq.s32.totalorder %s18, 0
      %p87 = por %p85, %p86
      %s88 = ssub.s32 %s12, %s19
      %p89 = scmp.eq.s32.totalorder %s88, 0
      %s91 = sadd.s32 %s90, 1
      %s92 = scalar_select %p89, %s90, %s91
      %p95 = pneg %p89
      %p96 = scmp.eq.s32.totalorder %s12, 1
      %p97 = por %p95, %p96
      %p98 = scmp.ne.s32.totalorder %s90, %s93
      %p99 = scmp.eq.s32.totalorder %s12, 0
      %p100 = por %p98, %p99
      %p101 = scmp.ne.s32.totalorder %s90, %s93
      %p102 = scmp.eq.s32.totalorder %s17, 1
      %p103 = por %p101, %p102
      %p104 = scmp.ne.s32.totalorder %s93, %s94
      %p105 = scmp.eq.s32.totalorder %s17, 0
      %p106 = por %p104, %p105
      %p107 = scmp.ne.s32.totalorder %s93, %s94
      %p108 = scmp.eq.s32.totalorder %s18, 1
      %p109 = por %p107, %p108
      %p111 = scmp.ne.s32.totalorder %s94, %s110
      %p112 = scmp.eq.s32.totalorder %s18, 0
      %p113 = por %p111, %p112
      %p114 = scmp.le.s32.totalorder 1, %s12
      %p115 = scmp.lt.s32.totalorder %s12, 3
      %p116 = pnand %p114, %p115
      %p117 = pneg %p116
      // Predicated region
      $region9: #{tpu_custom_call.1} parent=5 // pred_check
        _
      $region10: #{tpu_custom_call.1} parent=5 // pred_check_branch
        %119 = sbr.rel (%p116) target = $region12
      $region11: #{tpu_custom_call.1} parent=5 // pred_region
        %s120 = ssub.s32 %s12, 1
        // Predicated region
        $region13: #{tpu_custom_call.1} parent=11 // pred_check
          %p121 = pneg %p59
        $region14: #{tpu_custom_call.1} parent=11 // pred_check_branch
          %123 = sbr.rel (%p121) target = $region16
        $region15: #{tpu_custom_call.1} parent=11 // pred_region
          _
        $region16: #{tpu_custom_call.1} parent=11 // pred_fallthru
          _
        // Predicated region
        $region17: #{tpu_custom_call.1} parent=11 // pred_check
          %p124 = pneg %p80
        $region18: #{tpu_custom_call.1} parent=11 // pred_check_branch
          %126 = sbr.rel (%p124) target = $region20
        $region19: #{tpu_custom_call.1} parent=11 // pred_region
          _
        $region20: #{tpu_custom_call.1} parent=11 // pred_fallthru
          _
      $region12: #{tpu_custom_call.1} parent=5 // pred_fallthru
        _
      %p127 = scmp.lt.s32.totalorder %s12, 2
      // Predicated region
      $region21: #{tpu_custom_call.1} parent=5 // pred_check
        %p128 = pneg %p127
      $region22: #{tpu_custom_call.1} parent=5 // pred_check_branch
        %130 = sbr.rel (%p128) target = $region24
      $region23: #{tpu_custom_call.1} parent=5 // pred_region
        // Predicated region
        $region25: #{tpu_custom_call.1} parent=23 // pred_check
          %p131 = pneg %p32
        $region26: #{tpu_custom_call.1} parent=23 // pred_check_branch
          %133 = sbr.rel (%p131) target = $region28
        $region27: #{tpu_custom_call.1} parent=23 // pred_region
          %s134 = smul.u32 4, %s12
          %p135 = scmp.lt.s32.totalorder %s134, 7
          %s136 = scalar_select %p135, %s134, 7
          %s137 = smul.addr %s136, 8
          %s138 = scalar_lea.vmem %s0, %s137
          %s139 = smul.u32 4, %s12
        $region28: #{tpu_custom_call.1} parent=23 // pred_fallthru
          _
      $region24: #{tpu_custom_call.1} parent=5 // pred_fallthru
        _
      %p140 = scmp.le.s32.totalorder 1, %s12
      %p141 = scmp.lt.s32.totalorder %s12, 3
      %p142 = pnand %p140, %p141
      %p143 = pneg %p142
      // Predicated region
      $region29: #{tpu_custom_call.1} parent=5 // pred_check
        _
      $region30: #{tpu_custom_call.1} parent=5 // pred_check_branch
        %145 = sbr.rel (%p142) target = $region32
      $region31: #{tpu_custom_call.1} parent=5 // pred_region
        %s146 = ssub.s32 %s12, 1
        %s147 = smul.u32 4, %s17
        %p148 = scmp.lt.s32.totalorder %s147, 7
        %s149 = scalar_select %p148, %s147, 7
        %s150 = smul.addr %s149, 8
        %s151 = scalar_lea.vmem %s0, %s150
        %p152 = pneg %p38
        %p153 = pneg %p35
        %p154 = pneg %p59
        %p155 = pneg %p56
        %p156 = pneg %p80
        %p157 = pneg %p77
        %p158 = pneg %p106
        %p159 = pneg %p103
        %s160 = sand.u32 %s93, 1
        %s161 = scalar_lea.sflag [#allocation3], %s160
        %s162 = sand.u32 %s93, 1
        %s163 = smul.addr %s162, 32
        %s164 = scalar_lea.vmem [#allocation2], %s163
        %s165 = smul.u32 4, %s17
        %p166 = scmp.lt.s32.totalorder %s165, 7
        %s167 = scalar_select %p166, %s165, 7
        %s168 = smul.addr %s167, 8
        %s169 = scalar_lea.vmem %s0, %s168
        %s170 = smul.u32 4, %s17
        %s171 = smul.u32 4, %s17
        %v172 = vld [vmem:[%s169] sm:$0xff]
        %v173 = vld [vmem:[%s169 + $0x8] sm:$0xff]
        %v174 = vld [vmem:[%s169 + $0x10] sm:$0xff]
        %v175 = vld [vmem:[%s169 + $0x18] sm:$0xff]
        %v176 = vld [vmem:[%s1] sm:$0x1]
        %178 = vset.pattern.permute.xlu0 0
        %179 = vperm.xlu0 %178, %v172
        %v180 = vpop.permute.xlu0 %179
        %183 = vset.pattern.permute.xlu0 0
        %184 = vperm.xlu0 %183, %v173
        %v185 = vpop.permute.xlu0 %184
        %188 = vset.pattern.permute.xlu0 0
        %189 = vperm.xlu0 %188, %v174
        %v190 = vpop.permute.xlu0 %189
        %193 = vset.pattern.permute.xlu0 0
        %194 = vperm.xlu0 %193, %v175
        %v195 = vpop.permute.xlu0 %194
        %v198 = vlaneseq
        %v199 = vshrl.u32 %v198, 7
        %v200 = vsub.s32 0, %v199
        %v201 = vrot.slane %v176, %v200
        %v203 = vmul.f32 %v180, %v201
        %v204 = vmul.f32 %v185, %v201
        %v205 = vmul.f32 %v190, %v201
        %v206 = vmul.f32 %v195, %v201
        %v207 = vld [vmem:[%s2] sm:$0x1]
        %v209 = vlaneseq
        %v210 = vshrl.u32 %v209, 7
        %v211 = vsub.s32 0, %v210
        %v212 = vrot.slane %v207, %v211
        %v214 = vadd.f32 %v203, %v212
        %v215 = vadd.f32 %v204, %v212
        %v216 = vadd.f32 %v205, %v212
        %v217 = vadd.f32 %v206, %v212
        %v218 = vand.u32 2147483647, %v214
        %vm219 = vcmp.le.f32.partialorder %v218, 0.7853982
        %vm220 = vcmp.lt.s32.totalorder %v214, 0
        %v221 = vand.u32 %v214, 2139095040
        %v222 = vshrl.u32 %v221, 23
        %v223 = vsub.s32 %v222, 127
        %v224 = vand.u32 2147483647, %v214
        %v225 = vand.u32 %v224, 8388607
        %v226 = vor.u32 %v225, 8388608
        %v227 = vsub.s32 0, %v226
        %v228 = vadd.s32 %v223, 1
        %vm229 = vcmp.gt.s32.totalorder %v228, 0
        %v230 = vsel %vm229, %v228, 0
        %v231 = vshrl.u32 %v230, 5
        %v232 = vand.u32 %v230, 31
        %v233 = vsub.s32 32, %v232
        %v234 = vshrl.u32 683565275, %v233
        %v235 = vshll.u32 683565275, %v232
        %v236 = vshrl.u32 2475754826, %v233
        %v237 = vor.u32 %v235, %v236
        %v238 = vshll.u32 2475754826, %v232
        %v239 = vshrl.u32 2131351028, %v233
        %v240 = vor.u32 %v238, %v239
        %v241 = vshll.u32 2131351028, %v232
        %v242 = vshrl.u32 2102212464, %v233
        %v243 = vor.u32 %v241, %v242
        %v244 = vshll.u32 2102212464, %v232
        %v245 = vshrl.u32 920167782, %v233
        %v246 = vor.u32 %v244, %v245
        %v247 = vshll.u32 920167782, %v232
        %v248 = vshrl.u32 1326507024, %v233
        %v249 = vor.u32 %v247, %v248
        %vm250 = vcmp.lt.s32.totalorder %v231, 1
        %vm251 = vcmp.lt.s32.totalorder %v231, 2
        %vm252 = vcmp.lt.s32.totalorder %v231, 3
        %vm253 = vcmp.lt.s32.totalorder %v231, 4
        %v254 = vsel %vm250, %v234, %v237
        %v255 = vsel %vm253, %v243, 2102212464
        %v256 = vsel %vm252, %v240, %v255
        %v257 = vsel %vm251, %v254, %v256
        %v258 = vsel %vm250, %v237, %v240
        %v259 = vsel %vm253, %v246, 920167782
        %v260 = vsel %vm252, %v243, %v259
        %v261 = vsel %vm251, %v258, %v260
        %v262 = vsel %vm250, %v240, %v243
        %v263 = vsel %vm253, %v249, 1326507024
        %v264 = vsel %vm252, %v246, %v263
        %v265 = vsel %vm251, %v262, %v264
        %v266 = vshll.u32 %v226, 8
        %v267 = vmul.u32.u64.compose %v266, %v265
        %v268 = vextract.low.u32 %v267
        %v269 = vextract.high.u32 %v267
        %v270 = vmul.u32.u64.compose %v266, %v261
        %v271 = vextract.low.u32 %v270
        %v272 = vextract.high.u32 %v270
        %v273 = vmul.u32 %v266, %v257
        %v274 = vadd.s32 %v269, %v271
        %vm275 = vc.u32 %v269, %v271
        %v276 = vadd.s32 %v272, 1
        %v277 = vsel %vm275, %v276, %v272
        %v278 = vadd.s32 %v273, %v277
        %v279 = vadd.s32 %v278, 536870912
        %v280 = vshrl.u32 %v279, 30
        %v281 = vshll.u32 %v280, 30
        %v282 = vsub.s32 %v278, %v281
        %vm283 = vcmp.lt.s32.totalorder %v282, 0
        %v284 = vsub.s32 0, %v282
        %v285 = vsel %vm283, %v284, %v282
        %v286 = vclz %v285
        %v287 = vsub.s32 %v286, 2
        %vm288 = vcmp.gt.s32.totalorder 0, %v287
        %v289 = vsel %vm288, 0, %v287
        %v290 = vsub.s32 32, %v289
        %v291 = vshll.u32 %v282, %v289
        %v292 = vshrl.u32 %v274, %v290
        %v293 = vor.u32 %v291, %v292
        %v294 = vsub.s32 4294967266, %v289
        %v295 = vadd.s32 %v294, 127
        %v296 = vshll.u32 %v295, 23
        %v297 = vor.u32 4788187, %v296
        %v298 = vand.u32 2147483647, %v297
        %v300 = vcvt.s32.f32 %v293
        %v301 = vmul.f32 %v300, %v298
        %v302 = vxor.u32 %v301, 2147483648
        %v303 = vsel %vm220, %v302, %v301
        %v304 = vsub.s32 4, %v280
        %v305 = vsel %vm220, %v304, %v280
        %v306 = vsel %vm219, %v214, %v303
        %v307 = vsel %vm219, 0, %v305
        %v308 = vcosq.f32.pop %v306
        %v309 = vsinq.f32.pop %v306
        %vm310 = vweird.f32 %v214
        %v311 = vadd.s32 %v307, 3
        %v312 = vand.u32 %v311, 3
        %vm313 = vcmp.lt.s32.totalorder %v312, 2
        %vm314 = vcmp.eq.s32.totalorder %v312, 0
        %v315 = vxor.u32 %v309, 2147483648
        %v316 = vsel %vm314, %v308, %v315
        %vm317 = vcmp.eq.s32.totalorder %v312, 2
        %v318 = vxor.u32 %v308, 2147483648
        %v319 = vsel %vm317, %v318, %v309
        %v320 = vsel %vm313, %v316, %v319
        %v321 = vsel %vm310, nan, %v320
        %v322 = vand.u32 2147483647, %v215
        %vm323 = vcmp.le.f32.partialorder %v322, 0.7853982
        %vm324 = vcmp.lt.s32.totalorder %v215, 0
        %v325 = vand.u32 %v215, 2139095040
        %v326 = vshrl.u32 %v325, 23
        %v327 = vsub.s32 %v326, 127
        %v328 = vand.u32 2147483647, %v215
        %v329 = vand.u32 %v328, 8388607
        %v330 = vor.u32 %v329, 8388608
        %v331 = vsub.s32 0, %v330
        %v332 = vadd.s32 %v327, 1
        %vm333 = vcmp.gt.s32.totalorder %v332, 0
        %v334 = vsel %vm333, %v332, 0
        %v335 = vshrl.u32 %v334, 5
        %v336 = vand.u32 %v334, 31
        %v337 = vsub.s32 32, %v336
        %v338 = vshrl.u32 683565275, %v337
        %v339 = vshll.u32 683565275, %v336
        %v340 = vshrl.u32 2475754826, %v337
        %v341 = vor.u32 %v339, %v340
        %v342 = vshll.u32 2475754826, %v336
        %v343 = vshrl.u32 2131351028, %v337
        %v344 = vor.u32 %v342, %v343
        %v345 = vshll.u32 2131351028, %v336
        %v346 = vshrl.u32 2102212464, %v337
        %v347 = vor.u32 %v345, %v346
        %v348 = vshll.u32 2102212464, %v336
        %v349 = vshrl.u32 920167782, %v337
        %v350 = vor.u32 %v348, %v349
        %v351 = vshll.u32 920167782, %v336
        %v352 = vshrl.u32 1326507024, %v337
        %v353 = vor.u32 %v351, %v352
        %vm354 = vcmp.lt.s32.totalorder %v335, 1
        %vm355 = vcmp.lt.s32.totalorder %v335, 2
        %vm356 = vcmp.lt.s32.totalorder %v335, 3
        %vm357 = vcmp.lt.s32.totalorder %v335, 4
        %v358 = vsel %vm354, %v338, %v341
        %v359 = vsel %vm357, %v347, 2102212464
        %v360 = vsel %vm356, %v344, %v359
        %v361 = vsel %vm355, %v358, %v360
        %v362 = vsel %vm354, %v341, %v344
        %v363 = vsel %vm357, %v350, 920167782
        %v364 = vsel %vm356, %v347, %v363
        %v365 = vsel %vm355, %v362, %v364
        %v366 = vsel %vm354, %v344, %v347
        %v367 = vsel %vm357, %v353, 1326507024
        %v368 = vsel %vm356, %v350, %v367
        %v369 = vsel %vm355, %v366, %v368
        %v370 = vshll.u32 %v330, 8
        %v371 = vmul.u32.u64.compose %v370, %v369
        %v372 = vextract.low.u32 %v371
        %v373 = vextract.high.u32 %v371
        %v374 = vmul.u32.u64.compose %v370, %v365
        %v375 = vextract.low.u32 %v374
        %v376 = vextract.high.u32 %v374
        %v377 = vmul.u32 %v370, %v361
        %v378 = vadd.s32 %v373, %v375
        %vm379 = vc.u32 %v373, %v375
        %v380 = vadd.s32 %v376, 1
        %v381 = vsel %vm379, %v380, %v376
        %v382 = vadd.s32 %v377, %v381
        %v383 = vadd.s32 %v382, 536870912
        %v384 = vshrl.u32 %v383, 30
        %v385 = vshll.u32 %v384, 30
        %v386 = vsub.s32 %v382, %v385
        %vm387 = vcmp.lt.s32.totalorder %v386, 0
        %v388 = vsub.s32 0, %v386
        %v389 = vsel %vm387, %v388, %v386
        %v390 = vclz %v389
        %v391 = vsub.s32 %v390, 2
        %vm392 = vcmp.gt.s32.totalorder 0, %v391
        %v393 = vsel %vm392, 0, %v391
        %v394 = vsub.s32 32, %v393
        %v395 = vshll.u32 %v386, %v393
        %v396 = vshrl.u32 %v378, %v394
        %v397 = vor.u32 %v395, %v396
        %v398 = vsub.s32 4294967266, %v393
        %v399 = vadd.s32 %v398, 127
        %v400 = vshll.u32 %v399, 23
        %v401 = vor.u32 4788187, %v400
        %v402 = vand.u32 2147483647, %v401
        %v404 = vcvt.s32.f32 %v397
        %v405 = vmul.f32 %v404, %v402
        %v406 = vxor.u32 %v405, 2147483648
        %v407 = vsel %vm324, %v406, %v405
        %v408 = vsub.s32 4, %v384
        %v409 = vsel %vm324, %v408, %v384
        %v410 = vsel %vm323, %v215, %v407
        %v411 = vsel %vm323, 0, %v409
        %v412 = vcosq.f32.pop %v410
        %v413 = vsinq.f32.pop %v410
        %vm414 = vweird.f32 %v215
        %v415 = vadd.s32 %v411, 3
        %v416 = vand.u32 %v415, 3
        %vm417 = vcmp.lt.s32.totalorder %v416, 2
        %vm418 = vcmp.eq.s32.totalorder %v416, 0
        %v419 = vxor.u32 %v413, 2147483648
        %v420 = vsel %vm418, %v412, %v419
        %vm421 = vcmp.eq.s32.totalorder %v416, 2
        %v422 = vxor.u32 %v412, 2147483648
        %v423 = vsel %vm421, %v422, %v413
        %v424 = vsel %vm417, %v420, %v423
        %v425 = vsel %vm414, nan, %v424
        %v426 = vand.u32 2147483647, %v216
        %vm427 = vcmp.le.f32.partialorder %v426, 0.7853982
        %vm428 = vcmp.lt.s32.totalorder %v216, 0
        %v429 = vand.u32 %v216, 2139095040
        %v430 = vshrl.u32 %v429, 23
        %v431 = vsub.s32 %v430, 127
        %v432 = vand.u32 2147483647, %v216
        %v433 = vand.u32 %v432, 8388607
        %v434 = vor.u32 %v433, 8388608
        %v435 = vsub.s32 0, %v434
        %v436 = vadd.s32 %v431, 1
        %vm437 = vcmp.gt.s32.totalorder %v436, 0
        %v438 = vsel %vm437, %v436, 0
        %v439 = vshrl.u32 %v438, 5
        %v440 = vand.u32 %v438, 31
        %v441 = vsub.s32 32, %v440
        %v442 = vshrl.u32 683565275, %v441
        %v443 = vshll.u32 683565275, %v440
        %v444 = vshrl.u32 2475754826, %v441
        %v445 = vor.u32 %v443, %v444
        %v446 = vshll.u32 2475754826, %v440
        %v447 = vshrl.u32 2131351028, %v441
        %v448 = vor.u32 %v446, %v447
        %v449 = vshll.u32 2131351028, %v440
        %v450 = vshrl.u32 2102212464, %v441
        %v451 = vor.u32 %v449, %v450
        %v452 = vshll.u32 2102212464, %v440
        %v453 = vshrl.u32 920167782, %v441
        %v454 = vor.u32 %v452, %v453
        %v455 = vshll.u32 920167782, %v440
        %v456 = vshrl.u32 1326507024, %v441
        %v457 = vor.u32 %v455, %v456
        %vm458 = vcmp.lt.s32.totalorder %v439, 1
        %vm459 = vcmp.lt.s32.totalorder %v439, 2
        %vm460 = vcmp.lt.s32.totalorder %v439, 3
        %vm461 = vcmp.lt.s32.totalorder %v439, 4
        %v462 = vsel %vm458, %v442, %v445
        %v463 = vsel %vm461, %v451, 2102212464
        %v464 = vsel %vm460, %v448, %v463
        %v465 = vsel %vm459, %v462, %v464
        %v466 = vsel %vm458, %v445, %v448
        %v467 = vsel %vm461, %v454, 920167782
        %v468 = vsel %vm460, %v451, %v467
        %v469 = vsel %vm459, %v466, %v468
        %v470 = vsel %vm458, %v448, %v451
        %v471 = vsel %vm461, %v457, 1326507024
        %v472 = vsel %vm460, %v454, %v471
        %v473 = vsel %vm459, %v470, %v472
        %v474 = vshll.u32 %v434, 8
        %v475 = vmul.u32.u64.compose %v474, %v473
        %v476 = vextract.low.u32 %v475
        %v477 = vextract.high.u32 %v475
        %v478 = vmul.u32.u64.compose %v474, %v469
        %v479 = vextract.low.u32 %v478
        %v480 = vextract.high.u32 %v478
        %v481 = vmul.u32 %v474, %v465
        %v482 = vadd.s32 %v477, %v479
        %vm483 = vc.u32 %v477, %v479
        %v484 = vadd.s32 %v480, 1
        %v485 = vsel %vm483, %v484, %v480
        %v486 = vadd.s32 %v481, %v485
        %v487 = vadd.s32 %v486, 536870912
        %v488 = vshrl.u32 %v487, 30
        %v489 = vshll.u32 %v488, 30
        %v490 = vsub.s32 %v486, %v489
        %vm491 = vcmp.lt.s32.totalorder %v490, 0
        %v492 = vsub.s32 0, %v490
        %v493 = vsel %vm491, %v492, %v490
        %v494 = vclz %v493
        %v495 = vsub.s32 %v494, 2
        %vm496 = vcmp.gt.s32.totalorder 0, %v495
        %v497 = vsel %vm496, 0, %v495
        %v498 = vsub.s32 32, %v497
        %v499 = vshll.u32 %v490, %v497
        %v500 = vshrl.u32 %v482, %v498
        %v501 = vor.u32 %v499, %v500
        %v502 = vsub.s32 4294967266, %v497
        %v503 = vadd.s32 %v502, 127
        %v504 = vshll.u32 %v503, 23
        %v505 = vor.u32 4788187, %v504
        %v506 = vand.u32 2147483647, %v505
        %v508 = vcvt.s32.f32 %v501
        %v509 = vmul.f32 %v508, %v506
        %v510 = vxor.u32 %v509, 2147483648
        %v511 = vsel %vm428, %v510, %v509
        %v512 = vsub.s32 4, %v488
        %v513 = vsel %vm428, %v512, %v488
        %v514 = vsel %vm427, %v216, %v511
        %v515 = vsel %vm427, 0, %v513
        %v516 = vcosq.f32.pop %v514
        %v517 = vsinq.f32.pop %v514
        %vm518 = vweird.f32 %v216
        %v519 = vadd.s32 %v515, 3
        %v520 = vand.u32 %v519, 3
        %vm521 = vcmp.lt.s32.totalorder %v520, 2
        %vm522 = vcmp.eq.s32.totalorder %v520, 0
        %v523 = vxor.u32 %v517, 2147483648
        %v524 = vsel %vm522, %v516, %v523
        %vm525 = vcmp.eq.s32.totalorder %v520, 2
        %v526 = vxor.u32 %v516, 2147483648
        %v527 = vsel %vm525, %v526, %v517
        %v528 = vsel %vm521, %v524, %v527
        %v529 = vsel %vm518, nan, %v528
        %v530 = vand.u32 2147483647, %v217
        %vm531 = vcmp.le.f32.partialorder %v530, 0.7853982
        %vm532 = vcmp.lt.s32.totalorder %v217, 0
        %v533 = vand.u32 %v217, 2139095040
        %v534 = vshrl.u32 %v533, 23
        %v535 = vsub.s32 %v534, 127
        %v536 = vand.u32 2147483647, %v217
        %v537 = vand.u32 %v536, 8388607
        %v538 = vor.u32 %v537, 8388608
        %v539 = vsub.s32 0, %v538
        %v540 = vadd.s32 %v535, 1
        %vm541 = vcmp.gt.s32.totalorder %v540, 0
        %v542 = vsel %vm541, %v540, 0
        %v543 = vshrl.u32 %v542, 5
        %v544 = vand.u32 %v542, 31
        %v545 = vsub.s32 32, %v544
        %v546 = vshrl.u32 683565275, %v545
        %v547 = vshll.u32 683565275, %v544
        %v548 = vshrl.u32 2475754826, %v545
        %v549 = vor.u32 %v547, %v548
        %v550 = vshll.u32 2475754826, %v544
        %v551 = vshrl.u32 2131351028, %v545
        %v552 = vor.u32 %v550, %v551
        %v553 = vshll.u32 2131351028, %v544
        %v554 = vshrl.u32 2102212464, %v545
        %v555 = vor.u32 %v553, %v554
        %v556 = vshll.u32 2102212464, %v544
        %v557 = vshrl.u32 920167782, %v545
        %v558 = vor.u32 %v556, %v557
        %v559 = vshll.u32 920167782, %v544
        %v560 = vshrl.u32 1326507024, %v545
        %v561 = vor.u32 %v559, %v560
        %vm562 = vcmp.lt.s32.totalorder %v543, 1
        %vm563 = vcmp.lt.s32.totalorder %v543, 2
        %vm564 = vcmp.lt.s32.totalorder %v543, 3
        %vm565 = vcmp.lt.s32.totalorder %v543, 4
        %v566 = vsel %vm562, %v546, %v549
        %v567 = vsel %vm565, %v555, 2102212464
        %v568 = vsel %vm564, %v552, %v567
        %v569 = vsel %vm563, %v566, %v568
        %v570 = vsel %vm562, %v549, %v552
        %v571 = vsel %vm565, %v558, 920167782
        %v572 = vsel %vm564, %v555, %v571
        %v573 = vsel %vm563, %v570, %v572
        %v574 = vsel %vm562, %v552, %v555
        %v575 = vsel %vm565, %v561, 1326507024
        %v576 = vsel %vm564, %v558, %v575
        %v577 = vsel %vm563, %v574, %v576
        %v578 = vshll.u32 %v538, 8
        %v579 = vmul.u32.u64.compose %v578, %v577
        %v580 = vextract.low.u32 %v579
        %v581 = vextract.high.u32 %v579
        %v582 = vmul.u32.u64.compose %v578, %v573
        %v583 = vextract.low.u32 %v582
        %v584 = vextract.high.u32 %v582
        %v585 = vmul.u32 %v578, %v569
        %v586 = vadd.s32 %v581, %v583
        %vm587 = vc.u32 %v581, %v583
        %v588 = vadd.s32 %v584, 1
        %v589 = vsel %vm587, %v588, %v584
        %v590 = vadd.s32 %v585, %v589
        %v591 = vadd.s32 %v590, 536870912
        %v592 = vshrl.u32 %v591, 30
        %v593 = vshll.u32 %v592, 30
        %v594 = vsub.s32 %v590, %v593
        %vm595 = vcmp.lt.s32.totalorder %v594, 0
        %v596 = vsub.s32 0, %v594
        %v597 = vsel %vm595, %v596, %v594
        %v598 = vclz %v597
        %v599 = vsub.s32 %v598, 2
        %vm600 = vcmp.gt.s32.totalorder 0, %v599
        %v601 = vsel %vm600, 0, %v599
        %v602 = vsub.s32 32, %v601
        %v603 = vshll.u32 %v594, %v601
        %v604 = vshrl.u32 %v586, %v602
        %v605 = vor.u32 %v603, %v604
        %v606 = vsub.s32 4294967266, %v601
        %v607 = vadd.s32 %v606, 127
        %v608 = vshll.u32 %v607, 23
        %v609 = vor.u32 4788187, %v608
        %v610 = vand.u32 2147483647, %v609
        %v612 = vcvt.s32.f32 %v605
        %v613 = vmul.f32 %v612, %v610
        %v614 = vxor.u32 %v613, 2147483648
        %v615 = vsel %vm532, %v614, %v613
        %v616 = vsub.s32 4, %v592
        %v617 = vsel %vm532, %v616, %v592
        %v618 = vsel %vm531, %v217, %v615
        %v619 = vsel %vm531, 0, %v617
        %v620 = vcosq.f32.pop %v618
        %v621 = vsinq.f32.pop %v618
        %vm622 = vweird.f32 %v217
        %v623 = vadd.s32 %v619, 3
        %v624 = vand.u32 %v623, 3
        %vm625 = vcmp.lt.s32.totalorder %v624, 2
        %vm626 = vcmp.eq.s32.totalorder %v624, 0
        %v627 = vxor.u32 %v621, 2147483648
        %v628 = vsel %vm626, %v620, %v627
        %vm629 = vcmp.eq.s32.totalorder %v624, 2
        %v630 = vxor.u32 %v620, 2147483648
        %v631 = vsel %vm629, %v630, %v621
        %v632 = vsel %vm625, %v628, %v631
        %v633 = vsel %vm622, nan, %v632
        %634 = vst [vmem:[%s164] sm:$0xff] %v321
        %635 = vst [vmem:[%s164 + $0x8] sm:$0xff] %v425
        %636 = vst [vmem:[%s164 + $0x10] sm:$0xff] %v529
        %637 = vst [vmem:[%s164 + $0x18] sm:$0xff] %v633
        %s638 = sand.u32 %s93, 1
        %s639 = scalar_lea.sflag [#allocation3], %s638
        %s640 = sand.u32 %s93, 1
        %s641 = smul.addr %s640, 32
        %s642 = scalar_lea.vmem [#allocation2], %s641
        // Predicated region
        $region33: #{tpu_custom_call.1} parent=31 // pred_check
          %p643 = pneg %p103
        $region34: #{tpu_custom_call.1} parent=31 // pred_check_branch
          %645 = sbr.rel (%p643) target = $region36
        $region35: #{tpu_custom_call.1} parent=31 // pred_region
          %s646 = smul.u32 4, %s17
          %s648 = ssub.s32 512, 512
          %649 = vsyncadd %s639, %s648
          %s650 = smul.addr %s646, 128
          %s651 = scalar_lea.hbm %s3, %s650
          %s652 = sshll.u32 %s642, 4
          %s653 = int_to_ptr.vmem [resolvable:$true] %s652
          %658 = dma.vmem_to_hbm [thread:$0]  %s653, 512, %s651, %s639, 128, 128, 8
        $region36: #{tpu_custom_call.1} parent=31 // pred_fallthru
          _
      $region32: #{tpu_custom_call.1} parent=5 // pred_fallthru
        _
      %p659 = scmp.le.s32.totalorder 2, %s12
      // Predicated region
      $region37: #{tpu_custom_call.1} parent=5 // pred_check
        %p660 = pneg %p659
      $region38: #{tpu_custom_call.1} parent=5 // pred_check_branch
        %662 = sbr.rel (%p660) target = $region40
      $region39: #{tpu_custom_call.1} parent=5 // pred_region
        %s663 = ssub.s32 %s12, 2
        // Predicated region
        $region41: #{tpu_custom_call.1} parent=39 // pred_check
          %p664 = pneg %p109
        $region42: #{tpu_custom_call.1} parent=39 // pred_check_branch
          %666 = sbr.rel (%p664) target = $region44
        $region43: #{tpu_custom_call.1} parent=39 // pred_region
          %s667 = sand.u32 %s94, 1
          %s668 = scalar_lea.sflag [#allocation3], %s667
          %s669 = sand.u32 %s94, 1
          %s670 = smul.addr %s669, 32
          %s671 = scalar_lea.vmem [#allocation2], %s670
          %672 = dma.done %s668, 512
        $region44: #{tpu_custom_call.1} parent=39 // pred_fallthru
          _
      $region40: #{tpu_custom_call.1} parent=5 // pred_fallthru
        _
    $region6: #{tpu_custom_call.1} parent=1 // loop_footer
      %s16 = sadd.s32 1, %s12
    $region7: #{tpu_custom_call.1} parent=1 // loop_footer_branch
      %11 = sbr.rel target = $region3
    $region8: #{tpu_custom_call.1} parent=1 // loop_exit
      _
    %673 = vsyncpa [#allocation3], 1
    %s674 = scalar_lea.sflag [#allocation3], 1
    %675 = vsyncpa %s674, 1

</llo_original>
